<compile_context>
chip_gen: v7x
topology: tpu7x:2x2x1
jax: 0.10.0
libtpu: 0.0.40
codegen_flags: <defaults>
</compile_context>

<pallas_src>
import jax
import jax.numpy as jnp
from jax.experimental import pallas as pl
from jax.experimental.pallas import tpu as pltpu


def classifier_vilt_kernel(cls_ref, wp_ref, bp_ref, wc_ref, bc_ref, out_ref,
                           pooled_ref):
    """Fused ViLT pooler + classifier head.

    cls_ref    : [Bp, H]   CLS-token activations (bf16, VMEM-resident)
    wp_ref     : [H, H]    pooler dense weight   (bf16, VMEM-resident)
    bp_ref     : [1, H]    pooler dense bias     (f32,  VMEM-resident)
    wc_ref     : [H, tn]   classifier weight tile (bf16, streamed over grid)
    bc_ref     : [1, tn]   classifier bias tile   (f32,  streamed with W tile)
    out_ref    : [Bp, tn]  logits tile (f32)
    pooled_ref : [Bp, H]   bf16 scratch: tanh(cls @ Wp + bp), computed once
    """
    # Pooler runs exactly once (first grid step) and is cached in VMEM scratch
    # — no per-tile recompute, no per-tile casts.
    @pl.when(pl.program_id(0) == 0)
    def _():
        pooled = jnp.tanh(
            jnp.dot(cls_ref[...], wp_ref[...],
                    preferred_element_type=jnp.float32)
            + bp_ref[...]
        )
        pooled_ref[...] = pooled.astype(jnp.bfloat16)

    out_ref[...] = (
        jnp.dot(pooled_ref[...], wc_ref[...],
                preferred_element_type=jnp.float32)
        + bc_ref[...]
    ).astype(out_ref.dtype)


def _round_up(x, m):
    return -(-x // m) * m


def classifier_vilt_forward(hidden_states, w_pool, b_pool, w_cls, b_cls,
                            *, max_tn=4096, vmem_budget_bytes=24 << 20):
    """hidden_states: [B, S, H]; weights stored (in, out); returns [B, C]."""
    B, S, H = hidden_states.shape
    C = w_cls.shape[1]

    # Only the CLS row feeds the pooler: slice in the wrapper so the kernel
    # never touches the full [B, S, H] encoder output.  Cast to bf16 here and
    # pad batch to a multiple of 16 (dense bf16 sublane packing).
    cls_tok = hidden_states[:, 0, :].astype(jnp.bfloat16)
    B_pad = _round_up(max(B, 1), 16)
    if B_pad != B:
        cls_tok = jnp.pad(cls_tok, ((0, B_pad - B), (0, 0)))

    # Tile width: prefer ONE grid step (single wide, lane-dense, 256-aligned
    # tile).  Only if the class count is huge do we stream wide tiles, keeping
    # double-buffered VMEM under budget.
    def _vmem_bytes(tn):
        resident = (B_pad * H * 2          # cls (bf16)
                    + 2 * H * H * 2        # pooler W (bf16; worst case 2 bufs)
                    + 2 * H * 4            # pooler b
                    + B_pad * H * 2)       # pooled scratch (bf16)
        streamed = 2 * (H * tn * 2         # classifier W tile (bf16), 2 bufs
                        + tn * 4           # classifier b tile
                        + B_pad * tn * 4)  # output tile (f32)
        return resident + streamed

    c_single = _round_up(C, 256)
    if _vmem_bytes(c_single) <= vmem_budget_bytes:
        tn = c_single                      # single-step grid (common case)
    else:
        tn = _round_up(min(max_tn, c_single), 256)
        while tn > 256 and _vmem_bytes(tn) > vmem_budget_bytes:
            tn -= 256
    C_pad = _round_up(C, tn)

    w_pool_bf = w_pool.astype(jnp.bfloat16)
    b_pool_f = jnp.asarray(b_pool, jnp.float32).reshape(1, H)
    w_cls_bf = jnp.pad(w_cls, ((0, 0), (0, C_pad - C))).astype(jnp.bfloat16)
    b_cls_f = jnp.pad(jnp.asarray(b_cls, jnp.float32).reshape(1, C),
                      ((0, 0), (0, C_pad - C)))

    grid = (C_pad // tn,)

    out = pl.pallas_call(
        classifier_vilt_kernel,
        out_shape=jax.ShapeDtypeStruct((B_pad, C_pad), jnp.float32),
        grid_spec=pltpu.PrefetchScalarGridSpec(
            num_scalar_prefetch=0,
            grid=grid,
            in_specs=[
                pl.BlockSpec((B_pad, H), lambda j: (0, 0)),   # CLS (resident)
                pl.BlockSpec((H, H), lambda j: (0, 0)),       # pooler W (resident)
                pl.BlockSpec((1, H), lambda j: (0, 0)),       # pooler b (resident)
                pl.BlockSpec((H, tn), lambda j: (0, j)),      # classifier W tile
                pl.BlockSpec((1, tn), lambda j: (0, j)),      # classifier b tile
            ],
            out_specs=pl.BlockSpec((B_pad, tn), lambda j: (0, j)),
            scratch_shapes=[pltpu.VMEM((B_pad, H), jnp.bfloat16)],
        ),
        compiler_params=pltpu.CompilerParams(
            # pooled scratch is written at step 0 and reused across steps.
            dimension_semantics=("arbitrary",),
            # Raise v5e's 16 MiB scoped default; 32 MiB is safe on v6e/v7x.
            vmem_limit_bytes=32 << 20,
        ),
    )(cls_tok, w_pool_bf, b_pool_f, w_cls_bf, b_cls_f)

    # Padded rows/columns hold garbage derived from biases; slice them away.
    return out[:B, :C]


def reference_forward_f32(hidden_states, w_pool, b_pool, w_cls, b_cls):
    cls_tok = hidden_states[:, 0, :]
    pooled = jnp.tanh(cls_tok @ w_pool + b_pool)
    return pooled @ w_cls + b_cls


def reference_forward_bf16(hidden_states, w_pool, b_pool, w_cls, b_cls):
    # Mirrors the kernel's quantization (bf16 MXU inputs, f32 accumulation).
    cls_tok = hidden_states[:, 0, :].astype(jnp.bfloat16)
    pooled = jnp.tanh(
        jnp.dot(cls_tok, w_pool.astype(jnp.bfloat16),
                preferred_element_type=jnp.float32) + b_pool
    )
    return jnp.dot(pooled.astype(jnp.bfloat16), w_cls.astype(jnp.bfloat16),
                   preferred_element_type=jnp.float32) + b_cls


if __name__ == "__main__":
    # Small deterministic config: vlt_emb_dim=32, num_answer_class=16.
    B, S, H, C = 2, 8, 32, 16

    key = jax.random.PRNGKey(0)
    k_hs, k_wp, k_bp, k_wc, k_bc = jax.random.split(key, 5)

    hidden_states = jax.random.normal(k_hs, (B, S, H), dtype=jnp.float32)
    # Deterministic synthetic parameters (stored [in, out]; same semantics as
    # PyTorch nn.Linear's x @ W.T + b — a real checkpoint must be transposed).
    w_pool = jax.random.normal(k_wp, (H, H), dtype=jnp.float32) * 0.02
    b_pool = jax.random.normal(k_bp, (1, H), dtype=jnp.float32) * 0.02
    w_cls = jax.random.normal(k_wc, (H, C), dtype=jnp.float32) * 0.02
    b_cls = jax.random.normal(k_bc, (1, C), dtype=jnp.float32) * 0.02

    out = classifier_vilt_forward(hidden_states, w_pool, b_pool, w_cls, b_cls)
    out = jax.block_until_ready(out)
    assert out.shape == (B, C)

    # Tight check against a reference with identical bf16 quantization.
    ref_q = reference_forward_bf16(hidden_states, w_pool, b_pool, w_cls, b_cls)
    assert jnp.allclose(out, ref_q, atol=1e-4, rtol=1e-4), "mismatch vs bf16 reference"

    # Loose check against the pure-f32 PyTorch-equivalent math.
    ref_f = reference_forward_f32(hidden_states, w_pool, b_pool, w_cls, b_cls)
    assert jnp.allclose(out, ref_f, atol=5e-2, rtol=5e-2), "mismatch vs f32 reference"

    print("KERNEL_OK")
</pallas_src>

<mosaic_0001>
module attributes {stable_mosaic.version = 11 : i64} {
  func.func @classifier_vilt_kernel(%arg0: i32, %arg1: memref<16x32xbf16, #tpu.memory_space<vmem>>, %arg2: memref<32x32xbf16, #tpu.memory_space<vmem>>, %arg3: memref<1x32xf32, #tpu.memory_space<vmem>>, %arg4: memref<32x256xbf16, #tpu.memory_space<vmem>>, %arg5: memref<1x256xf32, #tpu.memory_space<vmem>>, %arg6: memref<16x256xf32, #tpu.memory_space<vmem>>, %arg7: memref<16x32xbf16, #tpu.memory_space<vmem>>) attributes {dimension_semantics = [#tpu.dimension_semantics<arbitrary>], iteration_bounds = array<i64: 1>, scalar_prefetch = 0 : i64, scratch_operands = 1 : i64, tpu.core_type = #tpu.core_type<tc>, window_params = [{pipeline_mode = #tpu.pipeline_mode<synchronous>, transform_indices = @transform_0, window_bounds = array<i64: 16, 32>}, {pipeline_mode = #tpu.pipeline_mode<synchronous>, transform_indices = @transform_1, window_bounds = array<i64: 32, 32>}, {pipeline_mode = #tpu.pipeline_mode<synchronous>, transform_indices = @transform_2, window_bounds = array<i64: 1, 32>}, {transform_indices = @transform_3, window_bounds = array<i64: 32, 256>}, {transform_indices = @transform_4, window_bounds = array<i64: 1, 256>}, {transform_indices = @transform_5, window_bounds = array<i64: 16, 256>}]} {
    %c0_i32 = arith.constant 0 : i32
    %0 = arith.cmpi eq, %arg0, %c0_i32 : i32
    %1 = arith.extui %0 : i1 to i32
    %c0_i32_0 = arith.constant 0 : i32
    %2 = arith.cmpi ne, %1, %c0_i32_0 : i32
    scf.if %2 {
      %c0_8 = arith.constant 0 : index
      %c0_9 = arith.constant 0 : index
      %10 = vector.load %arg1[%c0_8, %c0_9] : memref<16x32xbf16, #tpu.memory_space<vmem>>, vector<16x32xbf16>
      %c0_10 = arith.constant 0 : index
      %c0_11 = arith.constant 0 : index
      %11 = vector.load %arg2[%c0_10, %c0_11] : memref<32x32xbf16, #tpu.memory_space<vmem>>, vector<32x32xbf16>
      %cst_12 = arith.constant dense<0.000000e+00> : vector<16x32xf32>
      %12 = tpu.matmul %10, %11, %cst_12 {dimension_numbers = #tpu.dot_dimension_numbers<[1], [0], [0], [1], [0, 0, 1, 1], [], []>} : vector<16x32xbf16>, vector<32x32xbf16>, vector<16x32xf32> -> vector<16x32xf32>
      %c0_13 = arith.constant 0 : index
      %c0_14 = arith.constant 0 : index
      %13 = vector.load %arg3[%c0_13, %c0_14] : memref<1x32xf32, #tpu.memory_space<vmem>>, vector<1x32xf32>
      %14 = vector.broadcast %13 : vector<1x32xf32> to vector<16x32xf32>
      %15 = arith.addf %12, %14 : vector<16x32xf32>
      %16 = math.tanh %15 : vector<16x32xf32>
      %17 = arith.truncf %16 : vector<16x32xf32> to vector<16x32xbf16>
      %c0_15 = arith.constant 0 : index
      %c0_16 = arith.constant 0 : index
      %18 = vector.load %arg7[%c0_15, %c0_16] : memref<16x32xbf16, #tpu.memory_space<vmem>>, vector<16x32xbf16>
      tpu.vector_store %arg7[%c0_15, %c0_16], %17 {strides = array<i32>} : memref<16x32xbf16, #tpu.memory_space<vmem>>, vector<16x32xbf16>,
    } else {
    }
    %c0 = arith.constant 0 : index
    %c0_1 = arith.constant 0 : index
    %3 = vector.load %arg7[%c0, %c0_1] : memref<16x32xbf16, #tpu.memory_space<vmem>>, vector<16x32xbf16>
    %c0_2 = arith.constant 0 : index
    %c0_3 = arith.constant 0 : index
    %4 = vector.load %arg4[%c0_2, %c0_3] : memref<32x256xbf16, #tpu.memory_space<vmem>>, vector<32x256xbf16>
    %cst = arith.constant dense<0.000000e+00> : vector<16x256xf32>
    %5 = tpu.matmul %3, %4, %cst {dimension_numbers = #tpu.dot_dimension_numbers<[1], [0], [0], [1], [0, 0, 1, 1], [], []>} : vector<16x32xbf16>, vector<32x256xbf16>, vector<16x256xf32> -> vector<16x256xf32>
    %c0_4 = arith.constant 0 : index
    %c0_5 = arith.constant 0 : index
    %6 = vector.load %arg5[%c0_4, %c0_5] : memref<1x256xf32, #tpu.memory_space<vmem>>, vector<1x256xf32>
    %7 = vector.broadcast %6 : vector<1x256xf32> to vector<16x256xf32>
    %8 = arith.addf %5, %7 : vector<16x256xf32>
    %c0_6 = arith.constant 0 : index
    %c0_7 = arith.constant 0 : index
    %9 = vector.load %arg6[%c0_6, %c0_7] : memref<16x256xf32, #tpu.memory_space<vmem>>, vector<16x256xf32>
    tpu.vector_store %arg6[%c0_6, %c0_7], %8 {strides = array<i32>} : memref<16x256xf32, #tpu.memory_space<vmem>>, vector<16x256xf32>,
    return
  }
  func.func @transform_0(%arg0: i32) -> (i32, i32) {
    %c0_i32 = arith.constant 0 : i32
    %c0_i32_0 = arith.constant 0 : i32
    %c0_i32_1 = arith.constant 0 : i32
    return %c0_i32, %c0_i32_0 : i32, i32
  }
  func.func @transform_1(%arg0: i32) -> (i32, i32) {
    %c0_i32 = arith.constant 0 : i32
    %c0_i32_0 = arith.constant 0 : i32
    %c0_i32_1 = arith.constant 0 : i32
    return %c0_i32, %c0_i32_0 : i32, i32
  }
  func.func @transform_2(%arg0: i32) -> (i32, i32) {
    %c0_i32 = arith.constant 0 : i32
    %c0_i32_0 = arith.constant 0 : i32
    %c0_i32_1 = arith.constant 0 : i32
    return %c0_i32, %c0_i32_0 : i32, i32
  }
  func.func @transform_3(%arg0: i32) -> (i32, i32) {
    %c0_i32 = arith.constant 0 : i32
    %c0_i32_0 = arith.constant 0 : i32
    return %c0_i32, %arg0 : i32, i32
  }
  func.func @transform_4(%arg0: i32) -> (i32, i32) {
    %c0_i32 = arith.constant 0 : i32
    %c0_i32_0 = arith.constant 0 : i32
    return %c0_i32, %arg0 : i32, i32
  }
  func.func @transform_5(%arg0: i32) -> (i32, i32) {
    %c0_i32 = arith.constant 0 : i32
    %c0_i32_0 = arith.constant 0 : i32
    return %c0_i32, %arg0 : i32, i32
  }
}

</mosaic_0001>

<llo_original>
// kernel: tpu_custom_call.1
$region0: #{tpu_custom_call.1}
  #allocation0 [shape = 'u32[]', space=smem, size = 0x4, offset = 0x4, fixed_abs, tag = 'smem constant byte address 0x4 - core index']
  #allocation1 [shape = 'u32[144,128]{1,0:T(1,128)}', space=vmem, size = 0x12000, scoped, tag = 'internal scratch']
  #allocation2 [shape = 'bf16[16,32]{1,0:T(16,128)(2,1)}', space=vmem, size = 0x1000, scoped, tag = 'scratch operand']
  %s0 = inlined_call_operand.hbm [shape: bf16[16,32], index: 0, kind: input, shape index: {}]
  %s1 = inlined_call_operand.hbm [shape: bf16[32,32], index: 1, kind: input, shape index: {}]
  %s2 = inlined_call_operand.vmem [shape: f32[1,32], index: 2, kind: input, shape index: {}]
  %s3 = inlined_call_operand.hbm [shape: bf16[32,256], index: 3, kind: input, shape index: {}]
  %s4 = inlined_call_operand.vmem [shape: f32[1,256], index: 4, kind: input, shape index: {}]
  %s5 = inlined_call_operand.hbm [shape: f32[16,256], index: 5, kind: output, shape index: {}]
  %s6 = sld [smem:[#allocation0]]
  $region46: #{tpu_custom_call.1} parent=0
    _
  %s8 = ssub.s32 1, %s6
  %s9 = scalar_select 0, %s8, %s6
  $region1: #{tpu_custom_call.1} parent=0
    #allocation3 [shape = 'u8[4096]{0}', space=vmem, size = 0x1000, scoped, tag = 'input window, operand 0, single buffered']
    #allocation4 [shape = 's32[1]{0}', space=sflag, size = 0x4, scoped, tag = 'scoped memory for tpu_custom_call.1']
    #allocation5 [shape = 's32[1]{0}', space=sflag, size = 0x4, scoped, tag = 'scoped memory for tpu_custom_call.1']
    #allocation6 [shape = 'u8[8192]{0}', space=vmem, size = 0x2000, scoped, tag = 'input window, operand 1, single buffered']
    #allocation7 [shape = 's32[1]{0}', space=sflag, size = 0x4, scoped, tag = 'scoped memory for tpu_custom_call.1']
    #allocation8 [shape = 'u8[16384]{0}', space=vmem, size = 0x4000, scoped, tag = 'input window, operand 3, single buffered']
    #allocation9 [shape = 'u8[16384]{0}', space=vmem, size = 0x4000, scoped, tag = 'output window, operand 0, single buffered']
    %10 = vsyncpa [#allocation4], 0
    %11 = vsyncpa [#allocation7], 0
    %12 = vsyncpa [#allocation5], 0
    // Predicated region
    $region2: #{tpu_custom_call.1} parent=1 // pred_check
      _
    $region3: #{tpu_custom_call.1} parent=1 // pred_check_branch
      %14 = sbr.rel (0) target = $region5
    $region4: #{tpu_custom_call.1} parent=1 // pred_region
      %s16 = ssub.s32 128, 128
      %17 = vsyncadd [#allocation4], %s16
      %s18 = sshll.u32 [#allocation3], 4
      %s19 = int_to_ptr.vmem [resolvable:$true] %s18
      %24 = dma.hbm_to_vmem [thread:$0]  %s0, 128, %s19, [#allocation4], 64, 64, 4
    $region5: #{tpu_custom_call.1} parent=1 // pred_fallthru
      _
    // Predicated region
    $region6: #{tpu_custom_call.1} parent=1 // pred_check
      _
    $region7: #{tpu_custom_call.1} parent=1 // pred_check_branch
      %26 = sbr.rel (0) target = $region9
    $region8: #{tpu_custom_call.1} parent=1 // pred_region
      %s28 = ssub.s32 256, 256
      %29 = vsyncadd [#allocation7], %s28
      %s30 = sshll.u32 [#allocation6], 4
      %s31 = int_to_ptr.vmem [resolvable:$true] %s30
      %36 = dma.hbm_to_vmem [thread:$0]  %s1, 256, %s31, [#allocation7], 64, 64, 4
    $region9: #{tpu_custom_call.1} parent=1 // pred_fallthru
      _
    // Predicated region
    $region10: #{tpu_custom_call.1} parent=1 // pred_check
      _
    $region11: #{tpu_custom_call.1} parent=1 // pred_check_branch
      %38 = sbr.rel (0) target = $region13
    $region12: #{tpu_custom_call.1} parent=1 // pred_region
      _
    $region13: #{tpu_custom_call.1} parent=1 // pred_fallthru
      _
    // Predicated region
    $region14: #{tpu_custom_call.1} parent=1 // pred_check
      _
    $region15: #{tpu_custom_call.1} parent=1 // pred_check_branch
      %40 = sbr.rel (0) target = $region17
    $region16: #{tpu_custom_call.1} parent=1 // pred_region
      %s42 = ssub.s32 512, 512
      %43 = vsyncadd [#allocation7], %s42
      %s44 = sshll.u32 [#allocation8], 4
      %s45 = int_to_ptr.vmem [resolvable:$true] %s44
      %50 = dma.hbm_to_vmem [thread:$0]  %s3, 512, %s45, [#allocation7], 128, 128, 8
    $region17: #{tpu_custom_call.1} parent=1 // pred_fallthru
      _
    // Predicated region
    $region18: #{tpu_custom_call.1} parent=1 // pred_check
      _
    $region19: #{tpu_custom_call.1} parent=1 // pred_check_branch
      %52 = sbr.rel (0) target = $region21
    $region20: #{tpu_custom_call.1} parent=1 // pred_region
      _
    $region21: #{tpu_custom_call.1} parent=1 // pred_fallthru
      _
    // Predicated region
    $region22: #{tpu_custom_call.1} parent=1 // pred_check
      _
    $region23: #{tpu_custom_call.1} parent=1 // pred_check_branch
      %54 = sbr.rel (0) target = $region25
    $region24: #{tpu_custom_call.1} parent=1 // pred_region
      %55 = dma.done [#allocation4], 128
    $region25: #{tpu_custom_call.1} parent=1 // pred_fallthru
      _
    // Predicated region
    $region26: #{tpu_custom_call.1} parent=1 // pred_check
      _
    $region27: #{tpu_custom_call.1} parent=1 // pred_check_branch
      %57 = sbr.rel (0) target = $region29
    $region28: #{tpu_custom_call.1} parent=1 // pred_region
      %58 = dma.done [#allocation7], 256
    $region29: #{tpu_custom_call.1} parent=1 // pred_fallthru
      _
    // Predicated region
    $region30: #{tpu_custom_call.1} parent=1 // pred_check
      _
    $region31: #{tpu_custom_call.1} parent=1 // pred_check_branch
      %60 = sbr.rel (0) target = $region33
    $region32: #{tpu_custom_call.1} parent=1 // pred_region
      %61 = dma.done [#allocation7], 512
    $region33: #{tpu_custom_call.1} parent=1 // pred_fallthru
      _
    %p63 = scmp.eq.s32.totalorder 0, 0
    // Predicated region
    $region34: #{tpu_custom_call.1} parent=1 // pred_check
      %p64 = pneg %p63
    $region35: #{tpu_custom_call.1} parent=1 // pred_check_branch
      %66 = sbr.rel (%p64) target = $region37
    $region36: #{tpu_custom_call.1} parent=1 // pred_region
      %v67 = vld [vmem:[#allocation3] sm:$0xf]
      %v68 = vld [vmem:[#allocation3 + $0x4] sm:$0xf]
      %v69 = vld [vmem:[#allocation6] sm:$0xf]
      %v70 = vld [vmem:[#allocation6 + $0x4] sm:$0xf]
      %v71 = vld [vmem:[#allocation6 + $0x8] sm:$0xf]
      %v72 = vld [vmem:[#allocation6 + $0xc] sm:$0xf]
      %v73 = vld [vmem:[%s2] sm:$0x1]
      %v75 = vlaneseq
      %v76 = vshrl.u32 %v75, 7
      %v77 = vsub.s32 0, %v76
      %v78 = vrot.slane %v73, %v77
      %v82 = vunpack.c.l.b16 %v67
      %v83 = vunpack.c.l.b16 %v68
      %v84 = vpack.c.b16 %v83, %v82
      %v89 = vunpack.c.l.b16 %v69
      %v90 = vunpack.c.l.b16 %v70
      %v91 = vunpack.c.l.b16 %v71
      %v92 = vunpack.c.l.b16 %v72
      %v93 = vpack.c.b16 %v90, %v89
      %v94 = vpack.c.b16 %v92, %v91
      %vm97 = vcmask 261120
      %v99 = vsel %vm97, %v84, 0
      %101 = vmatprep.subr.bf16.mxu0 0
      %102 = vmatpush1.bf16.msra.mxu0 %v93
      %103 = vmatprep.subr.bf16.mxu0 0
      %104 = vmatpush1.bf16.msra.mxu0 %v94
      %105 = vmatprep.subr.bf16.mxu0 0
      %106 = vmatpush1.bf16.msra.mxu0 0
      %107 = vmatprep.subr.bf16.mxu0 0
      %108 = vmatpush1.bf16.msra.mxu0 0
      %109 = vmatprep.subr.bf16.mxu0 0
      %110 = vmatpush1.bf16.msra.mxu0 0
      %111 = vmatprep.subr.bf16.mxu0 0
      %112 = vmatpush1.bf16.msra.mxu0 0
      %113 = vmatprep.subr.bf16.mxu0 0
      %114 = vmatpush1.bf16.msra.mxu0 0
      %115 = vmatprep.subr.bf16.mxu0 0
      %116 = vmatpush1.bf16.msra.mxu0 0
      %117 = vmatprep.subr.bf16.mxu0 0
      %118 = vmatpush1.bf16.msra.mxu0 0
      %119 = vmatprep.subr.bf16.mxu0 0
      %120 = vmatpush1.bf16.msra.mxu0 0
      %121 = vmatprep.subr.bf16.mxu0 0
      %122 = vmatpush1.bf16.msra.mxu0 0
      %123 = vmatprep.subr.bf16.mxu0 0
      %124 = vmatpush1.bf16.msra.mxu0 0
      %125 = vmatprep.subr.bf16.mxu0 0
      %126 = vmatpush1.bf16.msra.mxu0 0
      %127 = vmatprep.subr.bf16.mxu0 0
      %128 = vmatpush1.bf16.msra.mxu0 0
      %129 = vmatprep.subr.bf16.mxu0 0
      %130 = vmatpush1.bf16.msra.mxu0 0
      %131 = vmatprep.subr.bf16.mxu0 0
      %132 = vmatpush1.bf16.msra.mxu0 0
      %133 = vmatprep.mubr.bf16.mxu0 0
      %134 = vmatmul.mubr.bf16.gmra.mrb[0].mxu0 %v99
      %v135 = vpop.f32.mrb[0].mxu0
      %v136 = vadd.f32 %v78, %v135
      %v137 = vpop.f32.mrb[0].mxu0
      %v138 = vpop.f32.mrb[0].mxu0
      %v139 = vadd.f32 %v78, %v138
      %v140 = vpop.f32.mrb[0].mxu0
      %141 = vdwg.mxu0
      %v142 = vtanh.pop %v136
      %v143 = vtanh.pop %v139
      %v144 = vpack.c.bf16 %v143, %v142
      %145 = vst.msk [vmem:[#allocation2] sm:$0xff] %vm97, %v144
    $region37: #{tpu_custom_call.1} parent=1 // pred_fallthru
      _
    %v146 = vld [vmem:[#allocation2] sm:$0xff]
    %v147 = vld [vmem:[#allocation8] sm:$0xff]
    %v148 = vld [vmem:[#allocation8 + $0x8] sm:$0xff]
    %v149 = vld [vmem:[#allocation8 + $0x10] sm:$0xff]
    %v150 = vld [vmem:[#allocation8 + $0x18] sm:$0xff]
    %v151 = vld [vmem:[%s4] sm:$0x3]
    %v153 = vlaneseq
    %v154 = vshrl.u32 %v153, 7
    %v155 = vsub.s32 0, %v154
    %v156 = vrot.slane %v151, %v155
    %v157 = vlaneseq
    %v158 = vshrl.u32 %v157, 7
    %v159 = vsub.s32 1, %v158
    %v160 = vrot.slane %v151, %v159
    %v167 = vunpack.c.l.b16 %v147
    %v168 = vunpack.c.h.b16 %v147
    %v169 = vunpack.c.l.b16 %v148
    %v170 = vunpack.c.h.b16 %v148
    %v171 = vunpack.c.l.b16 %v149
    %v172 = vunpack.c.h.b16 %v149
    %v173 = vunpack.c.l.b16 %v150
    %v174 = vunpack.c.h.b16 %v150
    %v175 = vpack.c.b16 %v169, %v167
    %v176 = vpack.c.b16 %v170, %v168
    %v177 = vpack.c.b16 %v173, %v171
    %v178 = vpack.c.b16 %v174, %v172
    %vm183 = vcmask 261120
    %v185 = vsel %vm183, %v146, 0
    %187 = vmatprep.subr.bf16.mxu0 %v176
    %188 = vmatpush1.bf16.msra.mxu0 %v175
    %189 = vmatprep.subr.bf16.mxu0 %v178
    %190 = vmatpush1.bf16.msra.mxu0 %v177
    %191 = vmatprep.subr.bf16.mxu0 0
    %192 = vmatpush1.bf16.msra.mxu0 0
    %193 = vmatprep.subr.bf16.mxu0 0
    %194 = vmatpush1.bf16.msra.mxu0 0
    %195 = vmatprep.subr.bf16.mxu0 0
    %196 = vmatpush1.bf16.msra.mxu0 0
    %197 = vmatprep.subr.bf16.mxu0 0
    %198 = vmatpush1.bf16.msra.mxu0 0
    %199 = vmatprep.subr.bf16.mxu0 0
    %200 = vmatpush1.bf16.msra.mxu0 0
    %201 = vmatprep.subr.bf16.mxu0 0
    %202 = vmatpush1.bf16.msra.mxu0 0
    %203 = vmatprep.subr.bf16.mxu0 0
    %204 = vmatpush1.bf16.msra.mxu0 0
    %205 = vmatprep.subr.bf16.mxu0 0
    %206 = vmatpush1.bf16.msra.mxu0 0
    %207 = vmatprep.subr.bf16.mxu0 0
    %208 = vmatpush1.bf16.msra.mxu0 0
    %209 = vmatprep.subr.bf16.mxu0 0
    %210 = vmatpush1.bf16.msra.mxu0 0
    %211 = vmatprep.subr.bf16.mxu0 0
    %212 = vmatpush1.bf16.msra.mxu0 0
    %213 = vmatprep.subr.bf16.mxu0 0
    %214 = vmatpush1.bf16.msra.mxu0 0
    %215 = vmatprep.subr.bf16.mxu0 0
    %216 = vmatpush1.bf16.msra.mxu0 0
    %217 = vmatprep.subr.bf16.mxu0 0
    %218 = vmatpush1.bf16.msra.mxu0 0
    %219 = vmatprep.mubr.bf16.mxu0 0
    %220 = vmatmul.mubr.bf16.gmra.mrb[0].mxu0 %v185
    %v221 = vpop.f32.mrb[0].mxu0
    %v222 = vadd.f32 %v156, %v221
    %v223 = vpop.f32.mrb[0].mxu0
    %v224 = vadd.f32 %v160, %v223
    %v225 = vpop.f32.mrb[0].mxu0
    %v226 = vadd.f32 %v156, %v225
    %v227 = vpop.f32.mrb[0].mxu0
    %v228 = vadd.f32 %v160, %v227
    %229 = vdwg.mxu0
    %230 = vst [vmem:[#allocation9] sm:$0xff] %v222
    %231 = vst [vmem:[#allocation9 + $0x8] sm:$0xff] %v224
    %232 = vst [vmem:[#allocation9 + $0x10] sm:$0xff] %v226
    %233 = vst [vmem:[#allocation9 + $0x18] sm:$0xff] %v228
    // Predicated region
    $region38: #{tpu_custom_call.1} parent=1 // pred_check
      _
    $region39: #{tpu_custom_call.1} parent=1 // pred_check_branch
      %235 = sbr.rel (0) target = $region41
    $region40: #{tpu_custom_call.1} parent=1 // pred_region
      %s237 = ssub.s32 512, 512
      %238 = vsyncadd [#allocation5], %s237
      %s239 = sshll.u32 [#allocation9], 4
      %s240 = int_to_ptr.vmem [resolvable:$true] %s239
      %245 = dma.vmem_to_hbm [thread:$0]  %s240, 512, %s5, [#allocation5], 256, 256, 16
    $region41: #{tpu_custom_call.1} parent=1 // pred_fallthru
      _
    // Predicated region
    $region42: #{tpu_custom_call.1} parent=1 // pred_check
      _
    $region43: #{tpu_custom_call.1} parent=1 // pred_check_branch
      %247 = sbr.rel (0) target = $region45
    $region44: #{tpu_custom_call.1} parent=1 // pred_region
      %248 = dma.done [#allocation5], 512
    $region45: #{tpu_custom_call.1} parent=1 // pred_fallthru
      _
    %249 = vsyncpa [#allocation4], 1
    %250 = vsyncpa [#allocation7], 1
    %251 = vsyncpa [#allocation5], 1

</llo_original>
